<compile_context>
chip_gen: v5e
topology: v5e:2x2
jax: 0.10.0
libtpu: 0.0.40
codegen_flags: <defaults>
</compile_context>

<pallas_src>
import jax
import jax.numpy as jnp
from jax.experimental import pallas as pl
from jax.experimental.pallas import tpu as pltpu
import numpy as np

IMAGENET_MEAN = (0.485, 0.456, 0.406)
IMAGENET_STD = (0.229, 0.224, 0.225)


def normalize_kernel(x_ref, mean_ref, inv_std_ref, out_ref):
    # x_ref       : (1, C, HW)  one batch element, channels on sublanes, pixels on lanes
    # mean_ref    : (C, 1)      per-channel mean
    # inv_std_ref : (C, 1)      per-channel 1/std
    # out_ref     : (1, C, HW)
    x = x_ref[0]                                  # (C, HW)
    out_ref[0] = (x - mean_ref[...]) * inv_std_ref[...]


def normalization(img_nchw):
    """img_nchw: (N, C, H, W) float32 with C == 3. Returns (img - mean) / std."""
    N, C, H, W = img_nchw.shape
    HW = H * W

    # Free reshape: (N, C, H, W) and (N, C, H*W) are the same bytes (row-major),
    # but H*W on the last axis makes every vector load/store lane-dense.
    x2d = img_nchw.reshape(N, C, HW)

    mean = jnp.asarray(IMAGENET_MEAN, dtype=img_nchw.dtype).reshape(C, 1)
    inv_std = (1.0 / jnp.asarray(IMAGENET_STD, dtype=img_nchw.dtype)).reshape(C, 1)

    out = pl.pallas_call(
        normalize_kernel,
        out_shape=jax.ShapeDtypeStruct((N, C, HW), img_nchw.dtype),
        grid_spec=pltpu.PrefetchScalarGridSpec(
            num_scalar_prefetch=0,
            grid=(N,),
            in_specs=[
                pl.BlockSpec((1, C, HW), lambda n: (n, 0, 0)),   # one image per step
                pl.BlockSpec((C, 1), lambda n: (0, 0)),          # mean  (resident)
                pl.BlockSpec((C, 1), lambda n: (0, 0)),          # 1/std (resident)
            ],
            out_specs=pl.BlockSpec((1, C, HW), lambda n: (n, 0, 0)),
        ),
        # Batch elements are independent -> shard across TensorCores on v7x;
        # harmless (no-op) on single-TC v5e / v6e.
        compiler_params=pltpu.CompilerParams(dimension_semantics=("parallel",)),
    )(x2d, mean, inv_std)

    return out.reshape(N, C, H, W)


def ref_forward(img_nchw):
    """Pure-JAX reference matching the PyTorch Normalization.forward."""
    C = img_nchw.shape[1]
    mean = jnp.asarray(IMAGENET_MEAN, dtype=img_nchw.dtype).reshape(1, C, 1, 1)
    std = jnp.asarray(IMAGENET_STD, dtype=img_nchw.dtype).reshape(1, C, 1, 1)
    return (img_nchw - mean) / std


if __name__ == "__main__":
    # Small shapes consistent with the module: RGB images (C=3 matches the
    # hard-coded ImageNet mean/std), batch=2, 16x16 spatial.
    N, C, H, W = 2, 3, 16, 16

    key = jax.random.PRNGKey(0)
    img = jax.random.uniform(key, (N, C, H, W), jnp.float32)  # image-like in [0,1)

    out = jax.block_until_ready(normalization(img))
    ref = jax.block_until_ready(ref_forward(img))

    assert out.shape == (N, C, H, W), out.shape
    np.testing.assert_allclose(np.asarray(out), np.asarray(ref), atol=1e-5, rtol=1e-5)

    print("KERNEL_OK")
</pallas_src>

<mosaic_0001>
module attributes {stable_mosaic.version = 11 : i64} {
  func.func @normalize_kernel(%arg0: i32, %arg1: memref<1x3x256xf32, #tpu.memory_space<vmem>>, %arg2: memref<3x1xf32, #tpu.memory_space<vmem>>, %arg3: memref<3x1xf32, #tpu.memory_space<vmem>>, %arg4: memref<1x3x256xf32, #tpu.memory_space<vmem>>) attributes {dimension_semantics = [#tpu.dimension_semantics<parallel>], iteration_bounds = array<i64: 2>, scalar_prefetch = 0 : i64, scratch_operands = 0 : i64, tpu.core_type = #tpu.core_type<tc>, window_params = [{transform_indices = @transform_0, window_bounds = array<i64: 1, 3, 256>}, {pipeline_mode = #tpu.pipeline_mode<synchronous>, transform_indices = @transform_1, window_bounds = array<i64: 3, 1>}, {pipeline_mode = #tpu.pipeline_mode<synchronous>, transform_indices = @transform_2, window_bounds = array<i64: 3, 1>}, {transform_indices = @transform_3, window_bounds = array<i64: 1, 3, 256>}]} {
    %c0 = arith.constant 0 : index
    %c0_0 = arith.constant 0 : index
    %c0_1 = arith.constant 0 : index
    %0 = vector.load %arg1[%c0, %c0_0, %c0_1] : memref<1x3x256xf32, #tpu.memory_space<vmem>>, vector<1x3x256xf32>
    %1 = vector.shape_cast %0 : vector<1x3x256xf32> to vector<3x256xf32>
    %c0_2 = arith.constant 0 : index
    %c0_3 = arith.constant 0 : index
    %2 = vector.load %arg2[%c0_2, %c0_3] : memref<3x1xf32, #tpu.memory_space<vmem>>, vector<3x1xf32>
    %3 = vector.broadcast %2 : vector<3x1xf32> to vector<3x256xf32>
    %4 = arith.subf %1, %3 : vector<3x256xf32>
    %c0_4 = arith.constant 0 : index
    %c0_5 = arith.constant 0 : index
    %5 = vector.load %arg3[%c0_4, %c0_5] : memref<3x1xf32, #tpu.memory_space<vmem>>, vector<3x1xf32>
    %6 = vector.broadcast %5 : vector<3x1xf32> to vector<3x256xf32>
    %7 = arith.mulf %4, %6 : vector<3x256xf32>
    %c0_6 = arith.constant 0 : index
    %c0_7 = arith.constant 0 : index
    %c0_8 = arith.constant 0 : index
    %8 = vector.load %arg4[%c0_6, %c0_7, %c0_8] : memref<1x3x256xf32, #tpu.memory_space<vmem>>, vector<1x3x256xf32>
    %9 = vector.shape_cast %8 : vector<1x3x256xf32> to vector<3x256xf32>
    %10 = vector.shape_cast %7 : vector<3x256xf32> to vector<1x3x256xf32>
    tpu.vector_store %arg4[%c0_6, %c0_7, %c0_8], %10 {strides = array<i32>} : memref<1x3x256xf32, #tpu.memory_space<vmem>>, vector<1x3x256xf32>,
    return
  }
  func.func @transform_0(%arg0: i32) -> (i32, i32, i32) {
    %c0_i32 = arith.constant 0 : i32
    %c0_i32_0 = arith.constant 0 : i32
    %c0_i32_1 = arith.constant 0 : i32
    return %arg0, %c0_i32, %c0_i32_0 : i32, i32, i32
  }
  func.func @transform_1(%arg0: i32) -> (i32, i32) {
    %c0_i32 = arith.constant 0 : i32
    %c0_i32_0 = arith.constant 0 : i32
    %c0_i32_1 = arith.constant 0 : i32
    return %c0_i32, %c0_i32_0 : i32, i32
  }
  func.func @transform_2(%arg0: i32) -> (i32, i32) {
    %c0_i32 = arith.constant 0 : i32
    %c0_i32_0 = arith.constant 0 : i32
    %c0_i32_1 = arith.constant 0 : i32
    return %c0_i32, %c0_i32_0 : i32, i32
  }
  func.func @transform_3(%arg0: i32) -> (i32, i32, i32) {
    %c0_i32 = arith.constant 0 : i32
    %c0_i32_0 = arith.constant 0 : i32
    %c0_i32_1 = arith.constant 0 : i32
    return %arg0, %c0_i32, %c0_i32_0 : i32, i32, i32
  }
}

</mosaic_0001>

<llo_original>
// kernel: tpu_custom_call.1
$region0: #{tpu_custom_call.1}
  #allocation0 [shape = 'u32[]', space=smem, size = 0x4, offset = 0x4, fixed_abs, tag = 'smem constant byte address 0x4 - core index']
  #allocation1 [shape = 'u32[72,128]{1,0:T(1,128)}', space=vmem, size = 0x9000, scoped, tag = 'internal scratch']
  %s0 = inlined_call_operand.vmem [shape: f32[2,3,256], index: 0, kind: input, shape index: {}]
  %s1 = inlined_call_operand.vmem [shape: f32[3,1], index: 1, kind: input, shape index: {}]
  %s2 = inlined_call_operand.vmem [shape: f32[3,1], index: 2, kind: input, shape index: {}]
  %s3 = inlined_call_operand.vmem [shape: f32[2,3,256], index: 3, kind: output, shape index: {}]
  %s4 = sld [smem:[#allocation0]]
  $region45: #{tpu_custom_call.1} parent=0
    _
  %s6 = ssub.s32 1, %s4
  %s7 = scalar_select 0, %s6, %s4
  loop: start=0, step=1, limit=4
  $region2: #{tpu_custom_call.1} parent=0 // loop_pre_header
    _
  $region3: #{tpu_custom_call.1} parent=0 // loop_header
    %s9 = sphi 0, %s13
    %p10 = scmp.ge.s32.totalorder %s9, 4
    %s19 = sphi 0, %s21
    %s22 = sphi 0, %s19
    %s23 = sphi 0, %s22
    %s39 = sphi 0, %s23
    %s43 = sphi 0, %s43
    %s45 = sphi 0, %s43
    %s46 = sphi 0, %s45
    %s60 = sphi 0, %s46
    %s64 = sphi 0, %s64
    %s66 = sphi 0, %s64
    %s67 = sphi 0, %s66
    %s81 = sphi 0, %s67
    %s87 = sphi 0, %s89
    %s90 = sphi 0, %s87
    %s91 = sphi 0, %s90
    %s107 = sphi 0, %s91
  $region4: #{tpu_custom_call.1} parent=0 // loop_header_branch
    %12 = sbr.rel (%p10) target = $region8
  $region5: #{tpu_custom_call.1} parent=0 // loop_body
    %s14 = ssub.s32 %s9, 1
    %s15 = ssub.s32 %s9, 2
    %s16 = sadd.s32 %s9, 1
    %s17 = ssub.s32 %s9, %s16
    %p18 = scmp.eq.s32.totalorder %s17, 0
    %s20 = sadd.s32 %s19, 1
    %s21 = scalar_select %p18, %s19, %s20
    %p24 = pneg %p18
    %p25 = scmp.eq.s32.totalorder %s9, 1
    %p26 = por %p24, %p25
    %p27 = scmp.ne.s32.totalorder %s19, %s22
    %p28 = scmp.eq.s32.totalorder %s9, 0
    %p29 = por %p27, %p28
    %p30 = scmp.ne.s32.totalorder %s19, %s22
    %p31 = scmp.eq.s32.totalorder %s14, 1
    %p32 = por %p30, %p31
    %p33 = scmp.ne.s32.totalorder %s22, %s23
    %p34 = scmp.eq.s32.totalorder %s14, 0
    %p35 = por %p33, %p34
    %p36 = scmp.ne.s32.totalorder %s22, %s23
    %p37 = scmp.eq.s32.totalorder %s15, 1
    %p38 = por %p36, %p37
    %p40 = scmp.ne.s32.totalorder %s23, %s39
    %p41 = scmp.eq.s32.totalorder %s15, 0
    %p42 = por %p40, %p41
    %s44 = sadd.s32 %s43, 1
    %p47 = scmp.eq.s32.totalorder %s9, 1
    %p48 = scmp.ne.s32.totalorder %s43, %s45
    %p49 = scmp.eq.s32.totalorder %s9, 0
    %p50 = por %p48, %p49
    %p51 = scmp.ne.s32.totalorder %s43, %s45
    %p52 = scmp.eq.s32.totalorder %s14, 1
    %p53 = por %p51, %p52
    %p54 = scmp.ne.s32.totalorder %s45, %s46
    %p55 = scmp.eq.s32.totalorder %s14, 0
    %p56 = por %p54, %p55
    %p57 = scmp.ne.s32.totalorder %s45, %s46
    %p58 = scmp.eq.s32.totalorder %s15, 1
    %p59 = por %p57, %p58
    %p61 = scmp.ne.s32.totalorder %s46, %s60
    %p62 = scmp.eq.s32.totalorder %s15, 0
    %p63 = por %p61, %p62
    %s65 = sadd.s32 %s64, 1
    %p68 = scmp.eq.s32.totalorder %s9, 1
    %p69 = scmp.ne.s32.totalorder %s64, %s66
    %p70 = scmp.eq.s32.totalorder %s9, 0
    %p71 = por %p69, %p70
    %p72 = scmp.ne.s32.totalorder %s64, %s66
    %p73 = scmp.eq.s32.totalorder %s14, 1
    %p74 = por %p72, %p73
    %p75 = scmp.ne.s32.totalorder %s66, %s67
    %p76 = scmp.eq.s32.totalorder %s14, 0
    %p77 = por %p75, %p76
    %p78 = scmp.ne.s32.totalorder %s66, %s67
    %p79 = scmp.eq.s32.totalorder %s15, 1
    %p80 = por %p78, %p79
    %p82 = scmp.ne.s32.totalorder %s67, %s81
    %p83 = scmp.eq.s32.totalorder %s15, 0
    %p84 = por %p82, %p83
    %s85 = ssub.s32 %s9, %s16
    %p86 = scmp.eq.s32.totalorder %s85, 0
    %s88 = sadd.s32 %s87, 1
    %s89 = scalar_select %p86, %s87, %s88
    %p92 = pneg %p86
    %p93 = scmp.eq.s32.totalorder %s9, 1
    %p94 = por %p92, %p93
    %p95 = scmp.ne.s32.totalorder %s87, %s90
    %p96 = scmp.eq.s32.totalorder %s9, 0
    %p97 = por %p95, %p96
    %p98 = scmp.ne.s32.totalorder %s87, %s90
    %p99 = scmp.eq.s32.totalorder %s14, 1
    %p100 = por %p98, %p99
    %p101 = scmp.ne.s32.totalorder %s90, %s91
    %p102 = scmp.eq.s32.totalorder %s14, 0
    %p103 = por %p101, %p102
    %p104 = scmp.ne.s32.totalorder %s90, %s91
    %p105 = scmp.eq.s32.totalorder %s15, 1
    %p106 = por %p104, %p105
    %p108 = scmp.ne.s32.totalorder %s91, %s107
    %p109 = scmp.eq.s32.totalorder %s15, 0
    %p110 = por %p108, %p109
    %p111 = scmp.le.s32.totalorder 1, %s9
    %p112 = scmp.lt.s32.totalorder %s9, 3
    %p113 = pnand %p111, %p112
    %p114 = pneg %p113
    // Predicated region
    $region9: #{tpu_custom_call.1} parent=5 // pred_check
      _
    $region10: #{tpu_custom_call.1} parent=5 // pred_check_branch
      %116 = sbr.rel (%p113) target = $region12
    $region11: #{tpu_custom_call.1} parent=5 // pred_region
      %s117 = ssub.s32 %s9, 1
      // Predicated region
      $region13: #{tpu_custom_call.1} parent=11 // pred_check
        %p118 = pneg %p56
      $region14: #{tpu_custom_call.1} parent=11 // pred_check_branch
        %120 = sbr.rel (%p118) target = $region16
      $region15: #{tpu_custom_call.1} parent=11 // pred_region
        _
      $region16: #{tpu_custom_call.1} parent=11 // pred_fallthru
        _
      // Predicated region
      $region17: #{tpu_custom_call.1} parent=11 // pred_check
        %p121 = pneg %p77
      $region18: #{tpu_custom_call.1} parent=11 // pred_check_branch
        %123 = sbr.rel (%p121) target = $region20
      $region19: #{tpu_custom_call.1} parent=11 // pred_region
        _
      $region20: #{tpu_custom_call.1} parent=11 // pred_fallthru
        _
    $region12: #{tpu_custom_call.1} parent=5 // pred_fallthru
      _
    %p124 = scmp.lt.s32.totalorder %s9, 2
    // Predicated region
    $region21: #{tpu_custom_call.1} parent=5 // pred_check
      %p125 = pneg %p124
    $region22: #{tpu_custom_call.1} parent=5 // pred_check_branch
      %127 = sbr.rel (%p125) target = $region24
    $region23: #{tpu_custom_call.1} parent=5 // pred_region
      // Predicated region
      $region25: #{tpu_custom_call.1} parent=23 // pred_check
        %p128 = pneg %p29
      $region26: #{tpu_custom_call.1} parent=23 // pred_check_branch
        %130 = sbr.rel (%p128) target = $region28
      $region27: #{tpu_custom_call.1} parent=23 // pred_region
        %p131 = scmp.lt.s32.totalorder %s9, 1
        %s132 = scalar_select %p131, %s9, 1
        %s133 = smul.addr %s132, 2
        %s134 = smul.addr %s133, 4
        %s135 = scalar_lea.vmem %s0, %s134
      $region28: #{tpu_custom_call.1} parent=23 // pred_fallthru
        _
    $region24: #{tpu_custom_call.1} parent=5 // pred_fallthru
      _
    %p136 = scmp.le.s32.totalorder 1, %s9
    %p137 = scmp.lt.s32.totalorder %s9, 3
    %p138 = pnand %p136, %p137
    %p139 = pneg %p138
    // Predicated region
    $region29: #{tpu_custom_call.1} parent=5 // pred_check
      _
    $region30: #{tpu_custom_call.1} parent=5 // pred_check_branch
      %141 = sbr.rel (%p138) target = $region32
    $region31: #{tpu_custom_call.1} parent=5 // pred_region
      %s142 = ssub.s32 %s9, 1
      %p143 = scmp.lt.s32.totalorder %s14, 1
      %s144 = scalar_select %p143, %s14, 1
      %s145 = smul.addr %s144, 2
      %s146 = smul.addr %s145, 4
      %s147 = scalar_lea.vmem %s0, %s146
      %p148 = pneg %p35
      %p149 = pneg %p32
      %p150 = pneg %p56
      %p151 = pneg %p53
      %p152 = pneg %p77
      %p153 = pneg %p74
      %p154 = pneg %p103
      %p155 = pneg %p100
      %p156 = scmp.lt.s32.totalorder %s14, 1
      %s157 = scalar_select %p156, %s14, 1
      %s158 = smul.addr %s157, 2
      %s159 = smul.addr %s158, 4
      %s160 = scalar_lea.vmem %s3, %s159
      %p161 = scmp.lt.s32.totalorder %s14, 1
      %s162 = scalar_select %p161, %s14, 1
      %s163 = smul.addr %s162, 2
      %s164 = smul.addr %s163, 4
      %s165 = scalar_lea.vmem %s0, %s164
      %p166 = scmp.lt.s32.totalorder %s14, 1
      %s167 = scalar_select %p166, %s14, 1
      %s168 = smul.addr %s167, 2
      %s169 = smul.addr %s168, 4
      %s170 = scalar_lea.vmem %s3, %s169
      %v171 = vld [vmem:[%s165] sm:$0x77]
      %v172 = vld [vmem:[%s1] sm:$0x7]
      %174 = vset.pattern.permute.xlu0 0
      %175 = vperm.xlu0 %174, %v172
      %v176 = vpop.permute.xlu0 %175
      %v178 = vunpack.c.l.s4 839922192
      %v179 = vunpack.c.0.s8 %v178
      %v180 = vperm.slane %v176, %v179
      %v182 = vsub.f32 %v171, %v180
      %v183 = vld [vmem:[%s2] sm:$0x7]
      %185 = vset.pattern.permute.xlu0 0
      %186 = vperm.xlu0 %185, %v183
      %v187 = vpop.permute.xlu0 %186
      %v189 = vunpack.c.l.s4 839922192
      %v190 = vunpack.c.0.s8 %v189
      %v191 = vperm.slane %v187, %v190
      %v193 = vmul.f32 %v182, %v191
      %194 = vst [vmem:[%s170] sm:$0x77] %v193
      %p195 = scmp.lt.s32.totalorder %s14, 1
      %s196 = scalar_select %p195, %s14, 1
      %s197 = smul.addr %s196, 2
      %s198 = smul.addr %s197, 4
      %s199 = scalar_lea.vmem %s3, %s198
      // Predicated region
      $region33: #{tpu_custom_call.1} parent=31 // pred_check
        %p200 = pneg %p100
      $region34: #{tpu_custom_call.1} parent=31 // pred_check_branch
        %202 = sbr.rel (%p200) target = $region36
      $region35: #{tpu_custom_call.1} parent=31 // pred_region
        _
      $region36: #{tpu_custom_call.1} parent=31 // pred_fallthru
        _
    $region32: #{tpu_custom_call.1} parent=5 // pred_fallthru
      _
    %p203 = scmp.le.s32.totalorder 2, %s9
    // Predicated region
    $region37: #{tpu_custom_call.1} parent=5 // pred_check
      %p204 = pneg %p203
    $region38: #{tpu_custom_call.1} parent=5 // pred_check_branch
      %206 = sbr.rel (%p204) target = $region40
    $region39: #{tpu_custom_call.1} parent=5 // pred_region
      %s207 = ssub.s32 %s9, 2
      // Predicated region
      $region41: #{tpu_custom_call.1} parent=39 // pred_check
        %p208 = pneg %p106
      $region42: #{tpu_custom_call.1} parent=39 // pred_check_branch
        %210 = sbr.rel (%p208) target = $region44
      $region43: #{tpu_custom_call.1} parent=39 // pred_region
        %p211 = scmp.lt.s32.totalorder %s15, 1
        %s212 = scalar_select %p211, %s15, 1
        %s213 = smul.addr %s212, 2
        %s214 = smul.addr %s213, 4
        %s215 = scalar_lea.vmem %s3, %s214
      $region44: #{tpu_custom_call.1} parent=39 // pred_fallthru
        _
    $region40: #{tpu_custom_call.1} parent=5 // pred_fallthru
      _
  $region6: #{tpu_custom_call.1} parent=0 // loop_footer
    %s13 = sadd.s32 1, %s9
  $region7: #{tpu_custom_call.1} parent=0 // loop_footer_branch
    %8 = sbr.rel target = $region3
  $region8: #{tpu_custom_call.1} parent=0 // loop_exit
    _

</llo_original>
